<compile_context>
chip_gen: v5e
topology: v5e:2x2
jax: 0.10.0
libtpu: 0.0.40
codegen_flags: <defaults>
</compile_context>

<pallas_src>
import jax
import jax.numpy as jnp
from jax import lax
from jax.experimental import pallas as pl
from jax.experimental.pallas import tpu as pltpu

_LANE = 128
_VMEM_BUDGET = 48 << 20          # conservative: fits v7x 64 MiB/TC with headroom
_VMEM_LIMIT_CAP = 64 << 20


def _linear_kernel(x_ref, w_ref, b_ref, o_ref):
    # x_ref: [TB, D]        (f32 or bf16, streamed per batch tile)
    # w_ref: [D,  C_mx]     (pre-transposed, classes lane-dense, VMEM-resident)
    # b_ref: [1,  C_out]    (f32, VMEM-resident)
    # o_ref: [TB, C_out]    (f32; C_out <= C_mx)
    acc = lax.dot_general(
        x_ref[...],
        w_ref[...],
        dimension_numbers=(((1,), (0,)), ((), ())),    # standard x @ w
        preferred_element_type=jnp.float32,            # f32 accumulation on MXU
    )
    cols = o_ref.shape[1]                              # static at trace time
    o_ref[...] = (acc[:, :cols] + b_ref[...]).astype(o_ref.dtype)


def _vmem_need_bytes(tb, d, c_mx, c_out, x_bytes):
    return (2 * tb * d * x_bytes       # double-buffered x
            + 2 * d * c_mx * x_bytes   # weight (counted 2x to be safe)
            + 2 * c_mx * 4             # bias
            + 2 * tb * c_out * 4)      # double-buffered output


def linear_classifier_forward(features, weight, bias, *, block_b=1024):
    """Forward pass of LinearClassifier.

    features: [B, D] f32 or bf16 (dtype is consumed as-is; no wrapper cast)
    weight:   [C, D] f32 (PyTorch nn.Linear layout)
    bias:     [C]    f32
    returns:  [B, C] f32
    """
    B, D = features.shape
    C, D_w = weight.shape
    assert D == D_w, "feature dim mismatch"

    x_dtype = features.dtype
    x_bytes = jnp.dtype(x_dtype).itemsize

    # --- Class-dim handling ---------------------------------------------------
    # Matmul N dim padded to a lane multiple (MXU/vreg aligned, weight is tiny
    # and resident).  Output array only padded when C is already large.
    C_mx = max(_LANE, ((C + _LANE - 1) // _LANE) * _LANE)
    C_out = C_mx if C >= _LANE else C

    w_pad = weight
    b_pad = bias
    if C_mx != C:
        w_pad = jnp.pad(weight, ((0, C_mx - C), (0, 0)))
    if C_out != C:
        b_pad = jnp.pad(bias, (0, C_out - C))

    # One-time transpose in the wrapper: [D, C_mx], classes lane-dense.
    w_t = jnp.transpose(w_pad).astype(x_dtype)
    b2 = b_pad.reshape(1, C_out).astype(jnp.float32)   # bias add stays f32

    # --- Batch tiling ----------------------------------------------------------
    # bf16 packs 2 rows/sublane -> round TB to 16; f32 -> 8.
    sub = 16 if x_dtype == jnp.bfloat16 else 8
    TB = min(block_b, max(B, sub))
    TB = ((TB + sub - 1) // sub) * sub
    # Shrink TB until the double-buffered working set fits the VMEM budget.
    while TB > sub and _vmem_need_bytes(TB, D, C_mx, C_out, x_bytes) > _VMEM_BUDGET:
        TB = max(sub, ((TB // 2) // sub) * sub)

    B_pad = pl.cdiv(B, TB) * TB
    if B_pad != B:
        features = jnp.pad(features, ((0, B_pad - B), (0, 0)))

    vmem_need = _vmem_need_bytes(TB, D, C_mx, C_out, x_bytes)
    vmem_limit = int(min(max(int(vmem_need * 1.3) + (1 << 20), 32 << 20),
                         _VMEM_LIMIT_CAP))

    cost = pl.CostEstimate(
        flops=2 * B_pad * D * C_mx,
        transcendentals=0,
        bytes_accessed=(B_pad * D * x_bytes          # x read
                        + D * C_mx * x_bytes         # weight read (once)
                        + C_out * 4                  # bias read
                        + B_pad * C_out * 4),        # output write
    )

    out = pl.pallas_call(
        _linear_kernel,
        out_shape=jax.ShapeDtypeStruct((B_pad, C_out), jnp.float32),
        grid_spec=pltpu.PrefetchScalarGridSpec(
            num_scalar_prefetch=0,
            grid=(B_pad // TB,),
            in_specs=[
                # x streams per batch tile (double-buffered by Pallas)
                pl.BlockSpec((TB, D), lambda i: (i, 0)),
                # weight / bias: constant block index -> VMEM-resident
                pl.BlockSpec((D, C_mx), lambda i: (0, 0)),
                pl.BlockSpec((1, C_out), lambda i: (0, 0)),
            ],
            out_specs=pl.BlockSpec((TB, C_out), lambda i: (i, 0)),
        ),
        compiler_params=pltpu.CompilerParams(
            dimension_semantics=("parallel",),
            vmem_limit_bytes=vmem_limit,
        ),
        cost_estimate=cost,
    )(features, w_t, b2)

    if B_pad != B or C_out != C:
        out = out[:B, :C]
    return out


if __name__ == "__main__":
    # Small shapes consistent with the module: dim_mlp is the feature dim,
    # num_classes defaults to 3.
    batch = 8
    dim_mlp = 32
    num_classes = 3

    key = jax.random.PRNGKey(0)
    k_x, k_w, k_b = jax.random.split(key, 3)

    features = jax.random.normal(k_x, (batch, dim_mlp), dtype=jnp.float32)
    fc_weight = jax.random.normal(
        k_w, (num_classes, dim_mlp), dtype=jnp.float32) * 0.02
    fc_bias = jax.random.normal(k_b, (num_classes,), dtype=jnp.float32) * 0.02

    ref = features @ fc_weight.T + fc_bias

    # f32 path (exact semantics of the PyTorch module)
    out = linear_classifier_forward(features, fc_weight, fc_bias)
    out = jax.block_until_ready(out)
    assert out.shape == (batch, num_classes)
    assert jnp.allclose(out, ref, atol=1e-5, rtol=1e-5)

    # bf16 path: upstream layer produced bf16 activations (no wrapper cast of
    # the streamed x inside the kernel wrapper) — looser tolerance.
    out_bf16 = linear_classifier_forward(
        features.astype(jnp.bfloat16), fc_weight, fc_bias)
    out_bf16 = jax.block_until_ready(out_bf16)
    assert out_bf16.shape == (batch, num_classes)
    assert jnp.allclose(out_bf16, ref, atol=5e-2, rtol=5e-2)

    print("KERNEL_OK")
</pallas_src>

<mosaic_0001>
module attributes {stable_mosaic.version = 11 : i64} {
  func.func @_linear_kernel(%arg0: i32, %arg1: memref<8x32xf32, #tpu.memory_space<vmem>>, %arg2: memref<32x128xf32, #tpu.memory_space<vmem>>, %arg3: memref<1x3xf32, #tpu.memory_space<vmem>>, %arg4: memref<8x3xf32, #tpu.memory_space<vmem>>) attributes {dimension_semantics = [#tpu.dimension_semantics<parallel>], iteration_bounds = array<i64: 1>, scalar_prefetch = 0 : i64, scratch_operands = 0 : i64, tpu.core_type = #tpu.core_type<tc>, window_params = [{transform_indices = @transform_0, window_bounds = array<i64: 8, 32>}, {pipeline_mode = #tpu.pipeline_mode<synchronous>, transform_indices = @transform_1, window_bounds = array<i64: 32, 128>}, {pipeline_mode = #tpu.pipeline_mode<synchronous>, transform_indices = @transform_2, window_bounds = array<i64: 1, 3>}, {transform_indices = @transform_3, window_bounds = array<i64: 8, 3>}]} {
    %c0 = arith.constant 0 : index
    %c0_0 = arith.constant 0 : index
    %0 = vector.load %arg1[%c0, %c0_0] : memref<8x32xf32, #tpu.memory_space<vmem>>, vector<8x32xf32>
    %c0_1 = arith.constant 0 : index
    %c0_2 = arith.constant 0 : index
    %1 = vector.load %arg2[%c0_1, %c0_2] : memref<32x128xf32, #tpu.memory_space<vmem>>, vector<32x128xf32>
    %cst = arith.constant dense<0.000000e+00> : vector<8x128xf32>
    %2 = tpu.matmul %0, %1, %cst {dimension_numbers = #tpu.dot_dimension_numbers<[1], [0], [0], [1], [0, 0, 1, 1], [], []>} : vector<8x32xf32>, vector<32x128xf32>, vector<8x128xf32> -> vector<8x128xf32>
    %3 = vector.extract_strided_slice %2 {offsets = [0, 0], sizes = [8, 3], strides = [1, 1]} : vector<8x128xf32> to vector<8x3xf32>
    %c0_3 = arith.constant 0 : index
    %c0_4 = arith.constant 0 : index
    %4 = vector.load %arg3[%c0_3, %c0_4] : memref<1x3xf32, #tpu.memory_space<vmem>>, vector<1x3xf32>
    %5 = vector.broadcast %4 : vector<1x3xf32> to vector<8x3xf32>
    %6 = arith.addf %3, %5 : vector<8x3xf32>
    %c0_5 = arith.constant 0 : index
    %c0_6 = arith.constant 0 : index
    %7 = vector.load %arg4[%c0_5, %c0_6] : memref<8x3xf32, #tpu.memory_space<vmem>>, vector<8x3xf32>
    tpu.vector_store %arg4[%c0_5, %c0_6], %6 {strides = array<i32>} : memref<8x3xf32, #tpu.memory_space<vmem>>, vector<8x3xf32>,
    return
  }
  func.func @transform_0(%arg0: i32) -> (i32, i32) {
    %c0_i32 = arith.constant 0 : i32
    %c0_i32_0 = arith.constant 0 : i32
    return %arg0, %c0_i32 : i32, i32
  }
  func.func @transform_1(%arg0: i32) -> (i32, i32) {
    %c0_i32 = arith.constant 0 : i32
    %c0_i32_0 = arith.constant 0 : i32
    %c0_i32_1 = arith.constant 0 : i32
    return %c0_i32, %c0_i32_0 : i32, i32
  }
  func.func @transform_2(%arg0: i32) -> (i32, i32) {
    %c0_i32 = arith.constant 0 : i32
    %c0_i32_0 = arith.constant 0 : i32
    %c0_i32_1 = arith.constant 0 : i32
    return %c0_i32, %c0_i32_0 : i32, i32
  }
  func.func @transform_3(%arg0: i32) -> (i32, i32) {
    %c0_i32 = arith.constant 0 : i32
    %c0_i32_0 = arith.constant 0 : i32
    return %arg0, %c0_i32 : i32, i32
  }
}

</mosaic_0001>

<llo_original>
// kernel: tpu_custom_call.1
$region0: #{tpu_custom_call.1}
  #allocation0 [shape = 'u32[]', space=smem, size = 0x4, offset = 0x4, fixed_abs, tag = 'smem constant byte address 0x4 - core index']
  #allocation1 [shape = 'u32[72,128]{1,0:T(1,128)}', space=vmem, size = 0x9000, scoped, tag = 'internal scratch']
  %s0 = inlined_call_operand.hbm [shape: f32[8,32], index: 0, kind: input, shape index: {}]
  %s1 = inlined_call_operand.hbm [shape: f32[32,128], index: 1, kind: input, shape index: {}]
  %s2 = inlined_call_operand.vmem [shape: f32[1,3], index: 2, kind: input, shape index: {}]
  %s3 = inlined_call_operand.vmem [shape: f32[8,3], index: 3, kind: output, shape index: {}]
  %s4 = sld [smem:[#allocation0]]
  $region30: #{tpu_custom_call.1} parent=0
    _
  %s6 = ssub.s32 1, %s4
  %s7 = scalar_select 0, %s6, %s4
  $region1: #{tpu_custom_call.1} parent=0
    #allocation2 [shape = 'u8[4096]{0}', space=vmem, size = 0x1000, scoped, tag = 'input window, operand 0, single buffered']
    #allocation3 [shape = 's32[1]{0}', space=sflag, size = 0x4, scoped, tag = 'scoped memory for tpu_custom_call.1']
    #allocation4 [shape = 'u8[16384]{0}', space=vmem, size = 0x4000, scoped, tag = 'input window, operand 1, single buffered']
    #allocation5 [shape = 's32[1]{0}', space=sflag, size = 0x4, scoped, tag = 'scoped memory for tpu_custom_call.1']
    %8 = vsyncpa [#allocation3], 0
    %9 = vsyncpa [#allocation5], 0
    // Predicated region
    $region2: #{tpu_custom_call.1} parent=1 // pred_check
      _
    $region3: #{tpu_custom_call.1} parent=1 // pred_check_branch
      %11 = sbr.rel (0) target = $region5
    $region4: #{tpu_custom_call.1} parent=1 // pred_region
      %13 = vsyncadd [#allocation3], 0
      %s15 = sshll.u32 %s0, 4
      %s16 = int_to_ptr.hbm [resolvable:$true] %s15
      %s17 = sshll.u32 [#allocation2], 4
      %s18 = int_to_ptr.vmem [resolvable:$true] %s17
      %20 = dma.hbm_to_vmem [thread:$0]  %s16, 128, %s18, [#allocation3]
    $region5: #{tpu_custom_call.1} parent=1 // pred_fallthru
      _
    // Predicated region
    $region6: #{tpu_custom_call.1} parent=1 // pred_check
      _
    $region7: #{tpu_custom_call.1} parent=1 // pred_check_branch
      %22 = sbr.rel (0) target = $region9
    $region8: #{tpu_custom_call.1} parent=1 // pred_region
      %24 = vsyncadd [#allocation5], 0
      %s25 = sshll.u32 %s1, 4
      %s26 = int_to_ptr.hbm [resolvable:$true] %s25
      %s27 = sshll.u32 [#allocation4], 4
      %s28 = int_to_ptr.vmem [resolvable:$true] %s27
      %33 = dma.hbm_to_vmem [thread:$0]  %s26, 512, %s28, [#allocation5], 128, 128, 8
    $region9: #{tpu_custom_call.1} parent=1 // pred_fallthru
      _
    // Predicated region
    $region10: #{tpu_custom_call.1} parent=1 // pred_check
      _
    $region11: #{tpu_custom_call.1} parent=1 // pred_check_branch
      %35 = sbr.rel (0) target = $region13
    $region12: #{tpu_custom_call.1} parent=1 // pred_region
      _
    $region13: #{tpu_custom_call.1} parent=1 // pred_fallthru
      _
    // Predicated region
    $region14: #{tpu_custom_call.1} parent=1 // pred_check
      _
    $region15: #{tpu_custom_call.1} parent=1 // pred_check_branch
      %37 = sbr.rel (0) target = $region17
    $region16: #{tpu_custom_call.1} parent=1 // pred_region
      %39 = dma.done [#allocation3], 128
    $region17: #{tpu_custom_call.1} parent=1 // pred_fallthru
      _
    // Predicated region
    $region18: #{tpu_custom_call.1} parent=1 // pred_check
      _
    $region19: #{tpu_custom_call.1} parent=1 // pred_check_branch
      %41 = sbr.rel (0) target = $region21
    $region20: #{tpu_custom_call.1} parent=1 // pred_region
      %43 = dma.done [#allocation5], 512
    $region21: #{tpu_custom_call.1} parent=1 // pred_fallthru
      _
    %v44 = vld [vmem:[#allocation2] sm:$0xff]
    %v45 = vld [vmem:[#allocation4] sm:$0xff]
    %v46 = vld [vmem:[#allocation4 + $0x8] sm:$0xff]
    %v47 = vld [vmem:[#allocation4 + $0x10] sm:$0xff]
    %v48 = vld [vmem:[#allocation4 + $0x18] sm:$0xff]
    %vm49 = vcmask 261120
    %v51 = vsel %vm49, %v44, 0
    %53 = vmatpush.msra.mxu0 0.0
    %54 = vmatpush.msra.mxu0 0.0
    %55 = vmatpush.msra.mxu0 0.0
    %56 = vmatpush.msra.mxu0 0.0
    %57 = vmatpush.msra.mxu0 0.0
    %58 = vmatpush.msra.mxu0 0.0
    %59 = vmatpush.msra.mxu0 0.0
    %60 = vmatpush.msra.mxu0 0.0
    %61 = vmatpush.msra.mxu0 0.0
    %62 = vmatpush.msra.mxu0 0.0
    %63 = vmatpush.msra.mxu0 0.0
    %64 = vmatpush.msra.mxu0 0.0
    %65 = vmatpush.msra.mxu0 %v48
    %66 = vmatpush.msra.mxu0 %v47
    %67 = vmatpush.msra.mxu0 %v46
    %68 = vmatpush.msra.mxu0 %v45
    %69 = vmatmul.f32.gmra.mxu0 %v51
    %v70 = vpop.f32.mrf.mxu0
    %v71 = vadd.f32 0.0, %v70
    %72 = vdwg.mxu0
    %v73 = vld [vmem:[%s2] sm:$0x1]
    %v75 = vperm.slane %v73, 0
    %v77 = vadd.f32 %v71, %v75
    %vm78 = vcmask 23552
    %79 = vst.msk [vmem:[%s3] sm:$0xff] %vm78, %v77
    // Predicated region
    $region22: #{tpu_custom_call.1} parent=1 // pred_check
      _
    $region23: #{tpu_custom_call.1} parent=1 // pred_check_branch
      %81 = sbr.rel (0) target = $region25
    $region24: #{tpu_custom_call.1} parent=1 // pred_region
      _
    $region25: #{tpu_custom_call.1} parent=1 // pred_fallthru
      _
    // Predicated region
    $region26: #{tpu_custom_call.1} parent=1 // pred_check
      _
    $region27: #{tpu_custom_call.1} parent=1 // pred_check_branch
      %83 = sbr.rel (0) target = $region29
    $region28: #{tpu_custom_call.1} parent=1 // pred_region
      _
    $region29: #{tpu_custom_call.1} parent=1 // pred_fallthru
      _
    %84 = vsyncpa [#allocation3], 1
    %85 = vsyncpa [#allocation5], 1

</llo_original>
